<compile_context>
chip_gen: v7x
topology: tpu7x:2x2x1
jax: 0.10.0
libtpu: 0.0.40
codegen_flags: <defaults>
</compile_context>

<pallas_src>
import jax
import jax.numpy as jnp
from jax.experimental import pallas as pl
from jax.experimental.pallas import tpu as pltpu


def _round_up(v, m):
    return ((v + m - 1) // m) * m


def _device_info():
    """Returns (vmem_capacity_bytes, has_two_tensorcores, has_bf16_vpu)."""
    kind = ""
    try:
        kind = jax.devices()[0].device_kind.lower()
    except Exception:
        pass
    is_v7 = ("v7" in kind) or ("7x" in kind)
    vmem_cap = None
    try:
        vmem_cap = getattr(pltpu.get_tpu_info(), "vmem_capacity_bytes", None)
    except Exception:
        vmem_cap = None
    if not vmem_cap:
        vmem_cap = (64 if is_v7 else 128) * 1024 * 1024
    # 2 TensorCores per chip: v4 / v5p megacore, v7x dual-TC.
    two_tc = is_v7 or ("v4" in kind) or ("v5p" in kind)
    # Native bf16 VPU only on v6e / v7x (v5e would emulate -> keep f32 there).
    bf16_vpu = is_v7 or ("v6" in kind)
    return int(vmem_cap), two_tc, bf16_vpu


def _make_kernels(compute_dtype):
    def _hidden(x_ref, w1_ref, b1_ref):
        # First GEMM: bf16 MXU operands, f32 accumulation. Bias + ReLU run in
        # b1's dtype (bf16 on v6e/v7x, f32 on v5e), then re-cast for the MXU.
        h = jnp.dot(x_ref[...].astype(compute_dtype), w1_ref[...],
                    preferred_element_type=jnp.float32)
        h = jnp.maximum(h.astype(b1_ref.dtype) + b1_ref[...], 0)
        return h.astype(compute_dtype)

    def kernel_inplace(x_ref, w1_ref, b1_ref, w2_ref, b2_ref, o_ref):
        # f32 output: accumulate straight into the resident output block
        # (its index_map is constant over k), saving the acc scratch + copy.
        k = pl.program_id(1)

        @pl.when(k == 0)
        def _init():
            o_ref[...] = jnp.zeros_like(o_ref)

        h = _hidden(x_ref, w1_ref, b1_ref)
        o_ref[...] += jnp.dot(h, w2_ref[...], preferred_element_type=jnp.float32)

        @pl.when(k == pl.num_programs(1) - 1)
        def _finalize():
            o_ref[...] += b2_ref[...]
        # TODO(synk): Dropout(p=0) is identity; nonzero p would need
        # pltpu.prng_seed/prng_random_bits masking inside the kernel.

    def kernel_scratch(x_ref, w1_ref, b1_ref, w2_ref, b2_ref, o_ref, acc_ref):
        # Narrow output dtype: accumulate in an f32 VMEM scratch.
        k = pl.program_id(1)

        @pl.when(k == 0)
        def _init():
            acc_ref[...] = jnp.zeros_like(acc_ref)

        h = _hidden(x_ref, w1_ref, b1_ref)
        acc_ref[...] += jnp.dot(h, w2_ref[...], preferred_element_type=jnp.float32)

        @pl.when(k == pl.num_programs(1) - 1)
        def _finalize():
            o_ref[...] = (acc_ref[...] + b2_ref[...]).astype(o_ref.dtype)

    return kernel_inplace, kernel_scratch


def feed_forward(x, w1, b1, w2, b2, *, tm=None, th=None,
                 compute_dtype=jnp.bfloat16):
    """x: (B, T, E); w1: (E, H); b1: (H,); w2: (H, E); b2: (E,)."""
    B, T, E = x.shape
    H = w1.shape[1]
    M = B * T
    out_dtype = x.dtype

    vmem_cap, two_tc, bf16_vpu = _device_info()
    elem_dtype = jnp.bfloat16 if bf16_vpu else jnp.float32

    # ---- pad E and H up to the 128-lane width --------------------------------
    Ep = max(128, _round_up(E, 128))
    Hp = max(128, _round_up(H, 128))
    pe, ph = Ep - E, Hp - H

    x2 = x.reshape(M, E)
    if pe:
        x2 = jnp.pad(x2, ((0, 0), (0, pe)))
    w1p = jnp.pad(w1, ((0, pe), (0, ph))) if (pe or ph) else w1
    w2p = jnp.pad(w2, ((0, ph), (0, pe))) if (pe or ph) else w2
    b1p = jnp.pad(b1, (0, ph)) if ph else b1
    b2p = jnp.pad(b2, (0, pe)) if pe else b2

    # x keeps its input dtype (cast happens inside the kernel); weights are
    # cast once here since they are reused by every row tile.
    w1c = w1p.astype(compute_dtype)
    w2c = w2p.astype(compute_dtype)
    b1_2 = b1p.reshape(1, Hp).astype(elem_dtype)
    b2_2 = b2p.reshape(1, Ep).astype(jnp.float32)

    use_scratch = jnp.dtype(out_dtype) != jnp.dtype(jnp.float32)

    # ---- tile selection -------------------------------------------------------
    row_align = 8
    budget = int(0.75 * vmem_cap)          # headroom for Mosaic internal scratch

    if tm is None:
        tm = 1024
    tm = int(min(tm, M))
    if two_tc and tm >= M and M > row_align:
        # Prefer >= 2 steps on the "parallel" row axis only when a second
        # TensorCore exists; on single-TC chips this would just double the
        # per-step overhead and re-stream the weights.
        tm = min(M - 1, _round_up(-(-M // 2), row_align))
    if tm < M:
        tm = max(row_align, (tm // row_align) * row_align)

    # th: largest 128-multiple divisor of Hp within the (VMEM-aware) cap.
    th_divs = [128 * d for d in range(1, Hp // 128 + 1) if (Hp // 128) % d == 0]
    th_cap = 2048 if vmem_cap >= 100 * 1024 * 1024 else 1024
    if th is not None:
        th_cap = min(th_cap, max(128, int(th)))
    th = max(d for d in th_divs if d <= th_cap)

    def vmem_need(tm_, th_):
        eb = jnp.dtype(elem_dtype).itemsize
        cb = jnp.dtype(compute_dtype).itemsize
        return (2 * tm_ * Ep * x2.dtype.itemsize            # x double-buffer
                + 2 * Ep * th_ * cb + 2 * th_ * Ep * cb     # W1 / W2 double-buffers
                + 2 * th_ * eb + 2 * Ep * 4                 # b1 / b2
                + 2 * tm_ * Ep * jnp.dtype(out_dtype).itemsize   # out double-buffer
                + (tm_ * Ep * 4 if use_scratch else 0)      # acc scratch
                + tm_ * th_ * (4 + cb))                     # h (f32) + bf16 copy

    while vmem_need(tm, th) > budget:
        smaller = [d for d in th_divs if d < th]
        if smaller:
            th = smaller[-1]
        elif tm > row_align:
            tm = max(row_align, (tm // 2 // row_align) * row_align)
        else:
            break

    grid = (pl.cdiv(M, tm), Hp // th)
    n_row_tiles = grid[0]

    cost = pl.CostEstimate(
        flops=4 * M * Ep * Hp,               # two GEMMs, 2 flops per MAC
        transcendentals=0,
        bytes_accessed=int(
            M * Ep * x2.dtype.itemsize
            + (w1c.size * w1c.dtype.itemsize
               + w2c.size * w2c.dtype.itemsize
               + b1_2.size * b1_2.dtype.itemsize) * n_row_tiles   # re-streamed per row tile
            + b2_2.size * 4
            + M * Ep * jnp.dtype(out_dtype).itemsize),
    )

    kernel_inplace, kernel_scratch = _make_kernels(compute_dtype)
    kernel = kernel_scratch if use_scratch else kernel_inplace
    scratch_shapes = [pltpu.VMEM((tm, Ep), jnp.float32)] if use_scratch else []

    out = pl.pallas_call(
        kernel,
        out_shape=jax.ShapeDtypeStruct((M, Ep), out_dtype),
        grid_spec=pltpu.PrefetchScalarGridSpec(
            num_scalar_prefetch=0,
            grid=grid,
            in_specs=[
                pl.BlockSpec((tm, Ep), lambda i, k: (i, 0)),   # x rows (const over k)
                pl.BlockSpec((Ep, th), lambda i, k: (0, k)),   # W1 hidden tile
                pl.BlockSpec((1, th), lambda i, k: (0, k)),    # b1 hidden tile
                pl.BlockSpec((th, Ep), lambda i, k: (k, 0)),   # W2 hidden tile
                pl.BlockSpec((1, Ep), lambda i, k: (0, 0)),    # b2 (resident)
            ],
            out_specs=pl.BlockSpec((tm, Ep), lambda i, k: (i, 0)),
            scratch_shapes=scratch_shapes,
        ),
        compiler_params=pltpu.CompilerParams(
            dimension_semantics=("parallel", "arbitrary"),
            vmem_limit_bytes=budget,
        ),
        cost_estimate=cost,
    )(x2, w1c, b1_2, w2c, b2_2)

    if pe:
        out = out[:, :E]
    return out.reshape(B, T, E)


def reference_ffn(x, w1, b1, w2, b2, *, compute_dtype=jnp.bfloat16,
                  elem_dtype=jnp.float32):
    """Pure-JAX reference mirroring the kernel's precision recipe."""
    B, T, E = x.shape
    xb = x.reshape(-1, E).astype(compute_dtype)
    h = jnp.dot(xb, w1.astype(compute_dtype),
                preferred_element_type=jnp.float32)
    h = jnp.maximum(h.astype(elem_dtype) + b1.astype(elem_dtype), 0)
    y = jnp.dot(h.astype(compute_dtype), w2.astype(compute_dtype),
                preferred_element_type=jnp.float32) + b2.astype(jnp.float32)
    return y.reshape(B, T, E).astype(x.dtype)


if __name__ == "__main__":
    def make_params(key, dim, mult):
        hidden = dim * mult
        k1, k2, k3, k4 = jax.random.split(key, 4)
        bound1 = 1.0 / (dim ** 0.5)
        w1 = jax.random.uniform(k1, (dim, hidden), jnp.float32, -bound1, bound1)
        b1 = jax.random.uniform(k2, (hidden,), jnp.float32, -bound1, bound1)
        bound2 = 1.0 / (hidden ** 0.5)
        w2 = jax.random.uniform(k3, (hidden, dim), jnp.float32, -bound2, bound2)
        b2 = jax.random.uniform(k4, (dim,), jnp.float32, -bound2, bound2)
        return w1, b1, w2, b2

    _, _, _bf16_vpu = _device_info()
    elem = jnp.bfloat16 if _bf16_vpu else jnp.float32

    key = jax.random.PRNGKey(0)

    # ---- Test 1: module-scale toy (B=2, T=8, dim=32, mult=4 -> H=128) ----
    kx, kp, key = jax.random.split(key, 3)
    B, T, dim, mult = 2, 8, 32, 4
    x = jax.random.normal(kx, (B, T, dim), dtype=jnp.float32)
    w1, b1, w2, b2 = make_params(kp, dim, mult)

    y = jax.block_until_ready(feed_forward(x, w1, b1, w2, b2))
    ref = reference_ffn(x, w1, b1, w2, b2, elem_dtype=elem)          # matched precision
    ref32 = reference_ffn(x, w1, b1, w2, b2,
                          compute_dtype=jnp.float32,
                          elem_dtype=jnp.float32)                    # PyTorch f32
    assert y.shape == (B, T, dim)
    assert jnp.allclose(y, ref, atol=2e-3, rtol=2e-3), "mismatch vs matched reference"
    assert jnp.allclose(y, ref32, atol=5e-2, rtol=5e-2), "mismatch vs f32 reference"

    # ---- Test 2: exercise the (parallel, arbitrary) pipeline: grid (4, 2) ----
    kx, kp, key = jax.random.split(key, 3)
    B, T, dim, mult = 2, 128, 64, 4          # M=256, E->128 padded, H=256
    x = jax.random.normal(kx, (B, T, dim), dtype=jnp.float32)
    w1, b1, w2, b2 = make_params(kp, dim, mult)

    y = jax.block_until_ready(feed_forward(x, w1, b1, w2, b2, tm=64, th=128))
    ref = reference_ffn(x, w1, b1, w2, b2, elem_dtype=elem)
    assert jnp.allclose(y, ref, atol=2e-3, rtol=2e-3), "mismatch vs matched reference (tiled)"

    print("KERNEL_OK")
</pallas_src>

<mosaic_0001>
module attributes {stable_mosaic.version = 11 : i64} {
  func.func @kernel_inplace(%arg0: i32, %arg1: i32, %arg2: memref<16x128xf32, #tpu.memory_space<vmem>>, %arg3: memref<128x128xbf16, #tpu.memory_space<vmem>>, %arg4: memref<1x128xf32, #tpu.memory_space<vmem>>, %arg5: memref<128x128xbf16, #tpu.memory_space<vmem>>, %arg6: memref<1x128xf32, #tpu.memory_space<vmem>>, %arg7: memref<16x128xf32, #tpu.memory_space<vmem>>) attributes {dimension_semantics = [#tpu.dimension_semantics<parallel>, #tpu.dimension_semantics<arbitrary>], iteration_bounds = array<i64: 1, 1>, scalar_prefetch = 0 : i64, scratch_operands = 0 : i64, tpu.core_type = #tpu.core_type<tc>, window_params = [{transform_indices = @transform_0, window_bounds = array<i64: 16, 128>}, {transform_indices = @transform_1, window_bounds = array<i64: 128, 128>}, {transform_indices = @transform_2, window_bounds = array<i64: 1, 128>}, {transform_indices = @transform_3, window_bounds = array<i64: 128, 128>}, {pipeline_mode = #tpu.pipeline_mode<synchronous>, transform_indices = @transform_4, window_bounds = array<i64: 1, 128>}, {transform_indices = @transform_5, window_bounds = array<i64: 16, 128>}]} {
    %c0_i32 = arith.constant 0 : i32
    %0 = arith.cmpi eq, %arg1, %c0_i32 : i32
    %1 = arith.extui %0 : i1 to i32
    %c0_i32_0 = arith.constant 0 : i32
    %2 = arith.cmpi ne, %1, %c0_i32_0 : i32
    scf.if %2 {
      %cst_16 = arith.constant 0.000000e+00 : f32
      %21 = vector.broadcast %cst_16 : f32 to vector<16x128xf32>
      %c0_17 = arith.constant 0 : index
      %c0_18 = arith.constant 0 : index
      %22 = vector.load %arg7[%c0_17, %c0_18] : memref<16x128xf32, #tpu.memory_space<vmem>>, vector<16x128xf32>
      tpu.vector_store %arg7[%c0_17, %c0_18], %21 {strides = array<i32>} : memref<16x128xf32, #tpu.memory_space<vmem>>, vector<16x128xf32>,
    } else {
    }
    %c0 = arith.constant 0 : index
    %c0_1 = arith.constant 0 : index
    %3 = vector.load %arg2[%c0, %c0_1] : memref<16x128xf32, #tpu.memory_space<vmem>>, vector<16x128xf32>
    %4 = arith.truncf %3 : vector<16x128xf32> to vector<16x128xbf16>
    %c0_2 = arith.constant 0 : index
    %c0_3 = arith.constant 0 : index
    %5 = vector.load %arg3[%c0_2, %c0_3] : memref<128x128xbf16, #tpu.memory_space<vmem>>, vector<128x128xbf16>
    %cst = arith.constant dense<0.000000e+00> : vector<16x128xf32>
    %6 = tpu.matmul %4, %5, %cst {dimension_numbers = #tpu.dot_dimension_numbers<[1], [0], [0], [1], [0, 0, 1, 1], [], []>} : vector<16x128xbf16>, vector<128x128xbf16>, vector<16x128xf32> -> vector<16x128xf32>
    %c0_4 = arith.constant 0 : index
    %c0_5 = arith.constant 0 : index
    %7 = vector.load %arg4[%c0_4, %c0_5] : memref<1x128xf32, #tpu.memory_space<vmem>>, vector<1x128xf32>
    %8 = vector.broadcast %7 : vector<1x128xf32> to vector<16x128xf32>
    %9 = arith.addf %6, %8 : vector<16x128xf32>
    %cst_6 = arith.constant 0.000000e+00 : f32
    %10 = vector.broadcast %cst_6 : f32 to vector<16x128xf32>
    %11 = arith.maximumf %9, %10 : vector<16x128xf32>
    %12 = arith.truncf %11 : vector<16x128xf32> to vector<16x128xbf16>
    %c0_7 = arith.constant 0 : index
    %c0_8 = arith.constant 0 : index
    %13 = vector.load %arg7[%c0_7, %c0_8] : memref<16x128xf32, #tpu.memory_space<vmem>>, vector<16x128xf32>
    %c0_9 = arith.constant 0 : index
    %c0_10 = arith.constant 0 : index
    %14 = vector.load %arg5[%c0_9, %c0_10] : memref<128x128xbf16, #tpu.memory_space<vmem>>, vector<128x128xbf16>
    %cst_11 = arith.constant dense<0.000000e+00> : vector<16x128xf32>
    %15 = tpu.matmul %12, %14, %cst_11 {dimension_numbers = #tpu.dot_dimension_numbers<[1], [0], [0], [1], [0, 0, 1, 1], [], []>} : vector<16x128xbf16>, vector<128x128xbf16>, vector<16x128xf32> -> vector<16x128xf32>
    %16 = arith.addf %13, %15 : vector<16x128xf32>
    %c0_12 = arith.constant 0 : index
    %c0_13 = arith.constant 0 : index
    %17 = vector.load %arg7[%c0_12, %c0_13] : memref<16x128xf32, #tpu.memory_space<vmem>>, vector<16x128xf32>
    tpu.vector_store %arg7[%c0_12, %c0_13], %16 {strides = array<i32>} : memref<16x128xf32, #tpu.memory_space<vmem>>, vector<16x128xf32>,
    %c0_i32_14 = arith.constant 0 : i32
    %18 = arith.cmpi eq, %arg1, %c0_i32_14 : i32
    %19 = arith.extui %18 : i1 to i32
    %c0_i32_15 = arith.constant 0 : i32
    %20 = arith.cmpi ne, %19, %c0_i32_15 : i32
    scf.if %20 {
      %c0_16 = arith.constant 0 : index
      %c0_17 = arith.constant 0 : index
      %21 = vector.load %arg7[%c0_16, %c0_17] : memref<16x128xf32, #tpu.memory_space<vmem>>, vector<16x128xf32>
      %c0_18 = arith.constant 0 : index
      %c0_19 = arith.constant 0 : index
      %22 = vector.load %arg6[%c0_18, %c0_19] : memref<1x128xf32, #tpu.memory_space<vmem>>, vector<1x128xf32>
      %23 = vector.broadcast %22 : vector<1x128xf32> to vector<16x128xf32>
      %24 = arith.addf %21, %23 : vector<16x128xf32>
      %c0_20 = arith.constant 0 : index
      %c0_21 = arith.constant 0 : index
      %25 = vector.load %arg7[%c0_20, %c0_21] : memref<16x128xf32, #tpu.memory_space<vmem>>, vector<16x128xf32>
      tpu.vector_store %arg7[%c0_20, %c0_21], %24 {strides = array<i32>} : memref<16x128xf32, #tpu.memory_space<vmem>>, vector<16x128xf32>,
    } else {
    }
    return
  }
  func.func @transform_0(%arg0: i32, %arg1: i32) -> (i32, i32) {
    %c0_i32 = arith.constant 0 : i32
    %c0_i32_0 = arith.constant 0 : i32
    return %arg0, %c0_i32 : i32, i32
  }
  func.func @transform_1(%arg0: i32, %arg1: i32) -> (i32, i32) {
    %c0_i32 = arith.constant 0 : i32
    %c0_i32_0 = arith.constant 0 : i32
    return %c0_i32, %arg1 : i32, i32
  }
  func.func @transform_2(%arg0: i32, %arg1: i32) -> (i32, i32) {
    %c0_i32 = arith.constant 0 : i32
    %c0_i32_0 = arith.constant 0 : i32
    return %c0_i32, %arg1 : i32, i32
  }
  func.func @transform_3(%arg0: i32, %arg1: i32) -> (i32, i32) {
    %c0_i32 = arith.constant 0 : i32
    %c0_i32_0 = arith.constant 0 : i32
    return %arg1, %c0_i32 : i32, i32
  }
  func.func @transform_4(%arg0: i32, %arg1: i32) -> (i32, i32) {
    %c0_i32 = arith.constant 0 : i32
    %c0_i32_0 = arith.constant 0 : i32
    %c0_i32_1 = arith.constant 0 : i32
    return %c0_i32, %c0_i32_0 : i32, i32
  }
  func.func @transform_5(%arg0: i32, %arg1: i32) -> (i32, i32) {
    %c0_i32 = arith.constant 0 : i32
    %c0_i32_0 = arith.constant 0 : i32
    return %arg0, %c0_i32 : i32, i32
  }
}

</mosaic_0001>

<llo_original>
// kernel: tpu_custom_call.1
$region0: #{tpu_custom_call.1}
  #allocation0 [shape = 'u32[]', space=smem, size = 0x4, offset = 0x4, fixed_abs, tag = 'smem constant byte address 0x4 - core index']
  #allocation1 [shape = 'u32[144,128]{1,0:T(1,128)}', space=vmem, size = 0x12000, scoped, tag = 'internal scratch']
  %s0 = inlined_call_operand.hbm [shape: f32[16,128], index: 0, kind: input, shape index: {}]
  %s1 = inlined_call_operand.hbm [shape: bf16[128,128], index: 1, kind: input, shape index: {}]
  %s2 = inlined_call_operand.hbm [shape: f32[1,128], index: 2, kind: input, shape index: {}]
  %s3 = inlined_call_operand.hbm [shape: bf16[128,128], index: 3, kind: input, shape index: {}]
  %s4 = inlined_call_operand.hbm [shape: f32[1,128], index: 4, kind: input, shape index: {}]
  %s5 = inlined_call_operand.hbm [shape: f32[16,128], index: 5, kind: output, shape index: {}]
  %s6 = sld [smem:[#allocation0]]
  $region58: #{tpu_custom_call.1} parent=0
    _
  %s8 = ssub.s32 1, %s6
  %s9 = scalar_select 0, %s8, %s6
  $region1: #{tpu_custom_call.1} parent=0
    #allocation2 [shape = 'u8[8192]{0}', space=vmem, size = 0x2000, scoped, tag = 'input window, operand 0, single buffered']
    #allocation3 [shape = 's32[1]{0}', space=sflag, size = 0x4, scoped, tag = 'scoped memory for tpu_custom_call.1']
    #allocation4 [shape = 's32[1]{0}', space=sflag, size = 0x4, scoped, tag = 'scoped memory for tpu_custom_call.1']
    #allocation5 [shape = 'u8[32768]{0}', space=vmem, size = 0x8000, scoped, tag = 'input window, operand 1, single buffered']
    #allocation6 [shape = 's32[1]{0}', space=sflag, size = 0x4, scoped, tag = 'scoped memory for tpu_custom_call.1']
    #allocation7 [shape = 'u8[512]{0}', space=vmem, size = 0x400, scoped, tag = 'input window, operand 2, single buffered']
    #allocation8 [shape = 'u8[32768]{0}', space=vmem, size = 0x8000, scoped, tag = 'input window, operand 3, single buffered']
    #allocation9 [shape = 's32[1]{0}', space=sflag, size = 0x4, scoped, tag = 'scoped memory for tpu_custom_call.1']
    #allocation10 [shape = 'u8[512]{0}', space=vmem, size = 0x400, scoped, tag = 'input window, operand 4, single buffered']
    #allocation11 [shape = 'u8[8192]{0}', space=vmem, size = 0x2000, scoped, tag = 'output window, operand 0, single buffered']
    %10 = vsyncpa [#allocation3], 0
    %11 = vsyncpa [#allocation6], 0
    %12 = vsyncpa [#allocation9], 0
    %13 = vsyncpa [#allocation4], 0
    // Predicated region
    $region2: #{tpu_custom_call.1} parent=1 // pred_check
      _
    $region3: #{tpu_custom_call.1} parent=1 // pred_check_branch
      %15 = sbr.rel (0) target = $region5
    $region4: #{tpu_custom_call.1} parent=1 // pred_region
      %s17 = ssub.s32 256, 256
      %18 = vsyncadd [#allocation3], %s17
      %s19 = sshll.u32 [#allocation2], 4
      %s20 = int_to_ptr.vmem [resolvable:$true] %s19
      %25 = dma.hbm_to_vmem [thread:$0]  %s0, 256, %s20, [#allocation3], 128, 128, 8
    $region5: #{tpu_custom_call.1} parent=1 // pred_fallthru
      _
    // Predicated region
    $region6: #{tpu_custom_call.1} parent=1 // pred_check
      _
    $region7: #{tpu_custom_call.1} parent=1 // pred_check_branch
      %27 = sbr.rel (0) target = $region9
    $region8: #{tpu_custom_call.1} parent=1 // pred_region
      %s29 = ssub.s32 1024, 1024
      %30 = vsyncadd [#allocation6], %s29
      %s31 = sshll.u32 [#allocation5], 4
      %s32 = int_to_ptr.vmem [resolvable:$true] %s31
      %37 = dma.hbm_to_vmem [thread:$0]  %s1, 1024, %s32, [#allocation6], 64, 64, 4
    $region9: #{tpu_custom_call.1} parent=1 // pred_fallthru
      _
    // Predicated region
    $region10: #{tpu_custom_call.1} parent=1 // pred_check
      _
    $region11: #{tpu_custom_call.1} parent=1 // pred_check_branch
      %39 = sbr.rel (0) target = $region13
    $region12: #{tpu_custom_call.1} parent=1 // pred_region
      %s41 = ssub.s32 16, 16
      %42 = vsyncadd [#allocation6], %s41
      %s44 = sshll.u32 [#allocation7], 4
      %s45 = int_to_ptr.vmem [resolvable:$true] %s44
      %47 = dma.hbm_to_vmem [thread:$0]  %s2, 16, %s45, [#allocation6]
    $region13: #{tpu_custom_call.1} parent=1 // pred_fallthru
      _
    // Predicated region
    $region14: #{tpu_custom_call.1} parent=1 // pred_check
      _
    $region15: #{tpu_custom_call.1} parent=1 // pred_check_branch
      %49 = sbr.rel (0) target = $region17
    $region16: #{tpu_custom_call.1} parent=1 // pred_region
      %s51 = ssub.s32 1024, 1024
      %52 = vsyncadd [#allocation9], %s51
      %s53 = sshll.u32 [#allocation8], 4
      %s54 = int_to_ptr.vmem [resolvable:$true] %s53
      %59 = dma.hbm_to_vmem [thread:$0]  %s3, 1024, %s54, [#allocation9], 64, 64, 4
    $region17: #{tpu_custom_call.1} parent=1 // pred_fallthru
      _
    // Predicated region
    $region18: #{tpu_custom_call.1} parent=1 // pred_check
      _
    $region19: #{tpu_custom_call.1} parent=1 // pred_check_branch
      %61 = sbr.rel (0) target = $region21
    $region20: #{tpu_custom_call.1} parent=1 // pred_region
      %s63 = ssub.s32 16, 16
      %64 = vsyncadd [#allocation9], %s63
      %s66 = sshll.u32 [#allocation10], 4
      %s67 = int_to_ptr.vmem [resolvable:$true] %s66
      %69 = dma.hbm_to_vmem [thread:$0]  %s4, 16, %s67, [#allocation9]
    $region21: #{tpu_custom_call.1} parent=1 // pred_fallthru
      _
    // Predicated region
    $region22: #{tpu_custom_call.1} parent=1 // pred_check
      _
    $region23: #{tpu_custom_call.1} parent=1 // pred_check_branch
      %71 = sbr.rel (0) target = $region25
    $region24: #{tpu_custom_call.1} parent=1 // pred_region
      %72 = dma.done [#allocation3], 256
    $region25: #{tpu_custom_call.1} parent=1 // pred_fallthru
      _
    // Predicated region
    $region26: #{tpu_custom_call.1} parent=1 // pred_check
      _
    $region27: #{tpu_custom_call.1} parent=1 // pred_check_branch
      %74 = sbr.rel (0) target = $region29
    $region28: #{tpu_custom_call.1} parent=1 // pred_region
      %75 = dma.done [#allocation6], 1024
    $region29: #{tpu_custom_call.1} parent=1 // pred_fallthru
      _
    // Predicated region
    $region30: #{tpu_custom_call.1} parent=1 // pred_check
      _
    $region31: #{tpu_custom_call.1} parent=1 // pred_check_branch
      %77 = sbr.rel (0) target = $region33
    $region32: #{tpu_custom_call.1} parent=1 // pred_region
      %78 = dma.done [#allocation6], 16
    $region33: #{tpu_custom_call.1} parent=1 // pred_fallthru
      _
    // Predicated region
    $region34: #{tpu_custom_call.1} parent=1 // pred_check
      _
    $region35: #{tpu_custom_call.1} parent=1 // pred_check_branch
      %80 = sbr.rel (0) target = $region37
    $region36: #{tpu_custom_call.1} parent=1 // pred_region
      %81 = dma.done [#allocation9], 1024
    $region37: #{tpu_custom_call.1} parent=1 // pred_fallthru
      _
    // Predicated region
    $region38: #{tpu_custom_call.1} parent=1 // pred_check
      _
    $region39: #{tpu_custom_call.1} parent=1 // pred_check_branch
      %83 = sbr.rel (0) target = $region41
    $region40: #{tpu_custom_call.1} parent=1 // pred_region
      %84 = dma.done [#allocation9], 16
    $region41: #{tpu_custom_call.1} parent=1 // pred_fallthru
      _
    %p86 = scmp.eq.s32.totalorder 0, 0
    // Predicated region
    $region42: #{tpu_custom_call.1} parent=1 // pred_check
      %p87 = pneg %p86
    $region43: #{tpu_custom_call.1} parent=1 // pred_check_branch
      %89 = sbr.rel (%p87) target = $region45
    $region44: #{tpu_custom_call.1} parent=1 // pred_region
      %90 = vst [vmem:[#allocation11] sm:$0xff] 0.0
      %91 = vst [vmem:[#allocation11 + $0x8] sm:$0xff] 0.0
    $region45: #{tpu_custom_call.1} parent=1 // pred_fallthru
      _
    %v92 = vld [vmem:[#allocation2] sm:$0xff]
    %v93 = vld [vmem:[#allocation2 + $0x8] sm:$0xff]
    %v94 = vpack.c.bf16 %v93, %v92
    %v95 = vld [vmem:[#allocation5] sm:$0xf]
    %v96 = vld [vmem:[#allocation5 + $0x4] sm:$0xf]
    %v97 = vld [vmem:[#allocation5 + $0x8] sm:$0xf]
    %v98 = vld [vmem:[#allocation5 + $0xc] sm:$0xf]
    %v99 = vld [vmem:[#allocation5 + $0x10] sm:$0xf]
    %v100 = vld [vmem:[#allocation5 + $0x14] sm:$0xf]
    %v101 = vld [vmem:[#allocation5 + $0x18] sm:$0xf]
    %v102 = vld [vmem:[#allocation5 + $0x1c] sm:$0xf]
    %v103 = vld [vmem:[#allocation5 + $0x20] sm:$0xf]
    %v104 = vld [vmem:[#allocation5 + $0x24] sm:$0xf]
    %v105 = vld [vmem:[#allocation5 + $0x28] sm:$0xf]
    %v106 = vld [vmem:[#allocation5 + $0x2c] sm:$0xf]
    %v107 = vld [vmem:[#allocation5 + $0x30] sm:$0xf]
    %v108 = vld [vmem:[#allocation5 + $0x34] sm:$0xf]
    %v109 = vld [vmem:[#allocation5 + $0x38] sm:$0xf]
    %v110 = vld [vmem:[#allocation5 + $0x3c] sm:$0xf]
    %v111 = vld [vmem:[#allocation7] sm:$0x1]
    %v113 = vlaneseq
    %v114 = vshrl.u32 %v113, 7
    %v115 = vsub.s32 0, %v114
    %v116 = vrot.slane %v111, %v115
    %v134 = vunpack.c.l.b16 %v95
    %v135 = vunpack.c.l.b16 %v96
    %v136 = vunpack.c.l.b16 %v97
    %v137 = vunpack.c.l.b16 %v98
    %v138 = vunpack.c.l.b16 %v99
    %v139 = vunpack.c.l.b16 %v100
    %v140 = vunpack.c.l.b16 %v101
    %v141 = vunpack.c.l.b16 %v102
    %v142 = vunpack.c.l.b16 %v103
    %v143 = vunpack.c.l.b16 %v104
    %v144 = vunpack.c.l.b16 %v105
    %v145 = vunpack.c.l.b16 %v106
    %v146 = vunpack.c.l.b16 %v107
    %v147 = vunpack.c.l.b16 %v108
    %v148 = vunpack.c.l.b16 %v109
    %v149 = vunpack.c.l.b16 %v110
    %v150 = vpack.c.b16 %v135, %v134
    %v151 = vpack.c.b16 %v137, %v136
    %v152 = vpack.c.b16 %v139, %v138
    %v153 = vpack.c.b16 %v141, %v140
    %v154 = vpack.c.b16 %v143, %v142
    %v155 = vpack.c.b16 %v145, %v144
    %v156 = vpack.c.b16 %v147, %v146
    %v157 = vpack.c.b16 %v149, %v148
    %166 = vmatprep.subr.bf16.mxu0 0
    %167 = vmatpush1.bf16.msra.mxu0 %v150
    %168 = vmatprep.subr.bf16.mxu0 0
    %169 = vmatpush1.bf16.msra.mxu0 %v151
    %170 = vmatprep.subr.bf16.mxu0 0
    %171 = vmatpush1.bf16.msra.mxu0 %v152
    %172 = vmatprep.subr.bf16.mxu0 0
    %173 = vmatpush1.bf16.msra.mxu0 %v153
    %174 = vmatprep.subr.bf16.mxu0 0
    %175 = vmatpush1.bf16.msra.mxu0 %v154
    %176 = vmatprep.subr.bf16.mxu0 0
    %177 = vmatpush1.bf16.msra.mxu0 %v155
    %178 = vmatprep.subr.bf16.mxu0 0
    %179 = vmatpush1.bf16.msra.mxu0 %v156
    %180 = vmatprep.subr.bf16.mxu0 0
    %181 = vmatpush1.bf16.msra.mxu0 %v157
    %182 = vmatprep.subr.bf16.mxu0 0
    %183 = vmatpush1.bf16.msra.mxu0 0
    %184 = vmatprep.subr.bf16.mxu0 0
    %185 = vmatpush1.bf16.msra.mxu0 0
    %186 = vmatprep.subr.bf16.mxu0 0
    %187 = vmatpush1.bf16.msra.mxu0 0
    %188 = vmatprep.subr.bf16.mxu0 0
    %189 = vmatpush1.bf16.msra.mxu0 0
    %190 = vmatprep.subr.bf16.mxu0 0
    %191 = vmatpush1.bf16.msra.mxu0 0
    %192 = vmatprep.subr.bf16.mxu0 0
    %193 = vmatpush1.bf16.msra.mxu0 0
    %194 = vmatprep.subr.bf16.mxu0 0
    %195 = vmatpush1.bf16.msra.mxu0 0
    %196 = vmatprep.subr.bf16.mxu0 0
    %197 = vmatpush1.bf16.msra.mxu0 0
    %198 = vmatprep.mubr.bf16.mxu0 0
    %199 = vmatmul.mubr.bf16.gmra.mrb[0].mxu0 %v94
    %v200 = vpop.f32.mrb[0].mxu0
    %v201 = vadd.f32 %v116, %v200
    %v202 = vpop.f32.mrb[0].mxu0
    %v203 = vpop.f32.mrb[0].mxu0
    %v204 = vadd.f32 %v116, %v203
    %v205 = vpop.f32.mrb[0].mxu0
    %206 = vdwg.mxu0
    %v207 = vmax.f32 %v201, 0.0
    %v208 = vmax.f32 %v204, 0.0
    %v209 = vpack.c.bf16 %v208, %v207
    %v210 = vld [vmem:[#allocation11] sm:$0xff]
    %v211 = vld [vmem:[#allocation11 + $0x8] sm:$0xff]
    %v212 = vld [vmem:[#allocation8] sm:$0xf]
    %v213 = vld [vmem:[#allocation8 + $0x4] sm:$0xf]
    %v214 = vld [vmem:[#allocation8 + $0x8] sm:$0xf]
    %v215 = vld [vmem:[#allocation8 + $0xc] sm:$0xf]
    %v216 = vld [vmem:[#allocation8 + $0x10] sm:$0xf]
    %v217 = vld [vmem:[#allocation8 + $0x14] sm:$0xf]
    %v218 = vld [vmem:[#allocation8 + $0x18] sm:$0xf]
    %v219 = vld [vmem:[#allocation8 + $0x1c] sm:$0xf]
    %v220 = vld [vmem:[#allocation8 + $0x20] sm:$0xf]
    %v221 = vld [vmem:[#allocation8 + $0x24] sm:$0xf]
    %v222 = vld [vmem:[#allocation8 + $0x28] sm:$0xf]
    %v223 = vld [vmem:[#allocation8 + $0x2c] sm:$0xf]
    %v224 = vld [vmem:[#allocation8 + $0x30] sm:$0xf]
    %v225 = vld [vmem:[#allocation8 + $0x34] sm:$0xf]
    %v226 = vld [vmem:[#allocation8 + $0x38] sm:$0xf]
    %v227 = vld [vmem:[#allocation8 + $0x3c] sm:$0xf]
    %v244 = vunpack.c.l.b16 %v212
    %v245 = vunpack.c.l.b16 %v213
    %v246 = vunpack.c.l.b16 %v214
    %v247 = vunpack.c.l.b16 %v215
    %v248 = vunpack.c.l.b16 %v216
    %v249 = vunpack.c.l.b16 %v217
    %v250 = vunpack.c.l.b16 %v218
    %v251 = vunpack.c.l.b16 %v219
    %v252 = vunpack.c.l.b16 %v220
    %v253 = vunpack.c.l.b16 %v221
    %v254 = vunpack.c.l.b16 %v222
    %v255 = vunpack.c.l.b16 %v223
    %v256 = vunpack.c.l.b16 %v224
    %v257 = vunpack.c.l.b16 %v225
    %v258 = vunpack.c.l.b16 %v226
    %v259 = vunpack.c.l.b16 %v227
    %v260 = vpack.c.b16 %v245, %v244
    %v261 = vpack.c.b16 %v247, %v246
    %v262 = vpack.c.b16 %v249, %v248
    %v263 = vpack.c.b16 %v251, %v250
    %v264 = vpack.c.b16 %v253, %v252
    %v265 = vpack.c.b16 %v255, %v254
    %v266 = vpack.c.b16 %v257, %v256
    %v267 = vpack.c.b16 %v259, %v258
    %276 = vmatprep.subr.bf16.mxu0 0
    %277 = vmatpush1.bf16.msra.mxu0 %v260
    %278 = vmatprep.subr.bf16.mxu0 0
    %279 = vmatpush1.bf16.msra.mxu0 %v261
    %280 = vmatprep.subr.bf16.mxu0 0
    %281 = vmatpush1.bf16.msra.mxu0 %v262
    %282 = vmatprep.subr.bf16.mxu0 0
    %283 = vmatpush1.bf16.msra.mxu0 %v263
    %284 = vmatprep.subr.bf16.mxu0 0
    %285 = vmatpush1.bf16.msra.mxu0 %v264
    %286 = vmatprep.subr.bf16.mxu0 0
    %287 = vmatpush1.bf16.msra.mxu0 %v265
    %288 = vmatprep.subr.bf16.mxu0 0
    %289 = vmatpush1.bf16.msra.mxu0 %v266
    %290 = vmatprep.subr.bf16.mxu0 0
    %291 = vmatpush1.bf16.msra.mxu0 %v267
    %292 = vmatprep.subr.bf16.mxu0 0
    %293 = vmatpush1.bf16.msra.mxu0 0
    %294 = vmatprep.subr.bf16.mxu0 0
    %295 = vmatpush1.bf16.msra.mxu0 0
    %296 = vmatprep.subr.bf16.mxu0 0
    %297 = vmatpush1.bf16.msra.mxu0 0
    %298 = vmatprep.subr.bf16.mxu0 0
    %299 = vmatpush1.bf16.msra.mxu0 0
    %300 = vmatprep.subr.bf16.mxu0 0
    %301 = vmatpush1.bf16.msra.mxu0 0
    %302 = vmatprep.subr.bf16.mxu0 0
    %303 = vmatpush1.bf16.msra.mxu0 0
    %304 = vmatprep.subr.bf16.mxu0 0
    %305 = vmatpush1.bf16.msra.mxu0 0
    %306 = vmatprep.subr.bf16.mxu0 0
    %307 = vmatpush1.bf16.msra.mxu0 0
    %308 = vmatprep.mubr.bf16.mxu0 0
    %309 = vmatmul.mubr.bf16.gmra.mrb[0].mxu0 %v209
    %v310 = vpop.f32.mrb[0].mxu0
    %v311 = vadd.f32 0.0, %v310
    %v312 = vpop.f32.mrb[0].mxu0
    %v313 = vpop.f32.mrb[0].mxu0
    %v314 = vadd.f32 0.0, %v313
    %v315 = vpop.f32.mrb[0].mxu0
    %316 = vdwg.mxu0
    %v317 = vadd.f32 %v210, %v311
    %v318 = vadd.f32 %v211, %v314
    %319 = vst [vmem:[#allocation11] sm:$0xff] %v317
    %320 = vst [vmem:[#allocation11 + $0x8] sm:$0xff] %v318
    // Predicated region
    $region46: #{tpu_custom_call.1} parent=1 // pred_check
      %p321 = pneg %p86
    $region47: #{tpu_custom_call.1} parent=1 // pred_check_branch
      %323 = sbr.rel (%p321) target = $region49
    $region48: #{tpu_custom_call.1} parent=1 // pred_region
      %v324 = vld [vmem:[#allocation11] sm:$0xff]
      %v325 = vld [vmem:[#allocation11 + $0x8] sm:$0xff]
      %v326 = vld [vmem:[#allocation10] sm:$0x1]
      %v328 = vlaneseq
      %v329 = vshrl.u32 %v328, 7
      %v330 = vsub.s32 0, %v329
      %v331 = vrot.slane %v326, %v330
      %v333 = vadd.f32 %v324, %v331
      %v334 = vadd.f32 %v325, %v331
      %335 = vst [vmem:[#allocation11] sm:$0xff] %v333
      %336 = vst [vmem:[#allocation11 + $0x8] sm:$0xff] %v334
    $region49: #{tpu_custom_call.1} parent=1 // pred_fallthru
      _
    // Predicated region
    $region50: #{tpu_custom_call.1} parent=1 // pred_check
      _
    $region51: #{tpu_custom_call.1} parent=1 // pred_check_branch
      %338 = sbr.rel (0) target = $region53
    $region52: #{tpu_custom_call.1} parent=1 // pred_region
      %s340 = ssub.s32 256, 256
      %341 = vsyncadd [#allocation4], %s340
      %s342 = sshll.u32 [#allocation11], 4
      %s343 = int_to_ptr.vmem [resolvable:$true] %s342
      %348 = dma.vmem_to_hbm [thread:$0]  %s343, 256, %s5, [#allocation4], 128, 128, 8
    $region53: #{tpu_custom_call.1} parent=1 // pred_fallthru
      _
    // Predicated region
    $region54: #{tpu_custom_call.1} parent=1 // pred_check
      _
    $region55: #{tpu_custom_call.1} parent=1 // pred_check_branch
      %350 = sbr.rel (0) target = $region57
    $region56: #{tpu_custom_call.1} parent=1 // pred_region
      %351 = dma.done [#allocation4], 256
    $region57: #{tpu_custom_call.1} parent=1 // pred_fallthru
      _
    %352 = vsyncpa [#allocation3], 1
    %353 = vsyncpa [#allocation6], 1
    %354 = vsyncpa [#allocation9], 1
    %355 = vsyncpa [#allocation4], 1

</llo_original>
